<compile_context>
chip_gen: v7x
topology: tpu7x:2x2x1
jax: 0.10.0
libtpu: 0.0.40
codegen_flags: <defaults>
</compile_context>

<pallas_src>
import functools

import jax
import jax.numpy as jnp
from jax.experimental import pallas as pl
from jax.experimental.pallas import tpu as pltpu


def _pos_embed_kernel(x_ref, word_ref, char_ref, o_ref, *, lane_reps):
    # word_ref: (1, L)         -> sublane broadcast over the row block.
    # char_ref: (rows, char_w) -> replicate along whole lane groups up to L columns.
    char_bias = jnp.tile(char_ref[...], (1, lane_reps)) if lane_reps > 1 else char_ref[...]
    o_ref[...] = x_ref[...] + word_ref[...] + char_bias


def _choose_block_rows(num_rows, row_bytes, pipeline_budget_bytes):
    """Largest multiple-of-8 row block whose double-buffered pipeline footprint
    (x-in + out, 2 buffers each => 4x block bytes) fits the budget."""
    per_row = 4 * row_bytes
    max_rows = max(1, pipeline_budget_bytes // per_row)
    if max_rows >= num_rows:
        return num_rows
    if max_rows < 8:
        # Keep (8, 128) sublane alignment; the budget is advisory and 8 rows is tiny anyway.
        return min(8, num_rows)
    return (max_rows // 8) * 8


def position_embedder(x, word_table, char_table, *, pipeline_budget_bytes=8 << 20):
    """x: (A, W, C, D); word_table: (max_num_word, D); char_table: (max_char_per_word, D)."""
    A, W, C, D = x.shape
    L = W * C * D
    itemsize = x.dtype.itemsize

    # arange-gather over an nn.Embedding == leading-row slice of its table.
    # NOTE: tables are cast to x.dtype (exact at the f32 test config); PyTorch would promote
    # the whole output for mixed precision instead — we keep x's dtype for the HBM roofline.
    word_emb = word_table[:W].astype(x.dtype)                     # (W, D)
    char_emb = char_table[:A].astype(x.dtype)                     # (A, D)

    # Word positional bias in x's flattened (W*C*D) column layout: (1, L).
    word_row = jnp.broadcast_to(word_emb[:, None, :], (W, C, D)).reshape(1, L)

    # Char positional bias: lane-tile char_emb up to a full 128-lane vreg width when possible so
    # the in-kernel jnp.tile is whole-vreg lane-group replication (no sub-lane shuffles).
    if D <= 128 and 128 % D == 0 and L % 128 == 0:
        char_op = jnp.tile(char_emb, (1, 128 // D))               # (A, 128)
    else:
        char_op = char_emb                                        # (A, D) fallback
    char_w = char_op.shape[1]
    lane_reps = L // char_w

    x2 = x.reshape(A, L)

    block_rows = _choose_block_rows(A, L * itemsize, pipeline_budget_bytes)
    # v7x megacore: if the slab is large but would be a single grid step, split the rows into
    # >=2 blocks so the "parallel" axis can shard across both TensorCores.
    total_bytes = A * L * itemsize
    if block_rows >= A and total_bytes >= (4 << 20) and A >= 16:
        block_rows = max(8, ((A + 1) // 2 // 8) * 8)
    block_rows = min(block_rows, A)
    grid = (pl.cdiv(A, block_rows),)

    kernel = functools.partial(_pos_embed_kernel, lane_reps=lane_reps)

    out2 = pl.pallas_call(
        kernel,
        out_shape=jax.ShapeDtypeStruct((A, L), x.dtype),
        grid_spec=pltpu.PrefetchScalarGridSpec(
            num_scalar_prefetch=0,
            grid=grid,
            in_specs=[
                pl.BlockSpec((block_rows, L), lambda i: (i, 0)),        # x (lane-dense)
                pl.BlockSpec((1, L), lambda i: (0, 0)),                 # word bias row
                pl.BlockSpec((block_rows, char_w), lambda i: (i, 0)),   # char bias slab
            ],
            out_specs=pl.BlockSpec((block_rows, L), lambda i: (i, 0)),
        ),
        compiler_params=pltpu.CompilerParams(
            dimension_semantics=("parallel",),
        ),
        input_output_aliases={0: 0},  # out aliases x (same shape/dtype; x is dead after call)
        cost_estimate=pl.CostEstimate(
            flops=2 * A * L,
            transcendentals=0,
            bytes_accessed=(2 * A * L + L + A * char_w) * itemsize,
        ),
    )(x2, word_row, char_op)

    return out2.reshape(A, W, C, D)


if __name__ == "__main__":
    embedding_dim = 32
    max_num_word = 1024
    max_char_per_word = 128

    # input: [A=num_char_positions, W=num_word_positions, C, D]
    A, W, C, D = 8, 16, 2, embedding_dim

    key = jax.random.PRNGKey(0)
    kx, kw, kc = jax.random.split(key, 3)

    x = jax.random.normal(kx, (A, W, C, D), dtype=jnp.float32)
    # torch.nn.Embedding default init: N(0, 1)
    word_table = jax.random.normal(kw, (max_num_word, embedding_dim), dtype=jnp.float32)
    char_table = jax.random.normal(kc, (max_char_per_word, embedding_dim), dtype=jnp.float32)

    # Pure-JAX reference (mirrors the PyTorch forward exactly); computed before the kernel call
    # since the kernel marks its flattened input as aliasable with the output.
    ref = x + word_table[:W][None, :, None, :] + char_table[:A][:, None, None, :]

    out = position_embedder(x, word_table, char_table)
    out = jax.block_until_ready(out)

    assert out.shape == ref.shape and out.dtype == ref.dtype
    assert jnp.allclose(out, ref, atol=1e-6, rtol=1e-6)

    print("KERNEL_OK")
</pallas_src>

<mosaic_0001>
module attributes {stable_mosaic.version = 11 : i64} {
  func.func @_pos_embed_kernel(%arg0: i32, %arg1: memref<8x1024xf32, #tpu.memory_space<vmem>>, %arg2: memref<1x1024xf32, #tpu.memory_space<vmem>>, %arg3: memref<8x128xf32, #tpu.memory_space<vmem>>, %arg4: memref<8x1024xf32, #tpu.memory_space<vmem>>) attributes {dimension_semantics = [#tpu.dimension_semantics<parallel>], iteration_bounds = array<i64: 1>, scalar_prefetch = 0 : i64, scratch_operands = 0 : i64, tpu.core_type = #tpu.core_type<tc>, window_params = [{transform_indices = @transform_0, window_bounds = array<i64: 8, 1024>}, {pipeline_mode = #tpu.pipeline_mode<synchronous>, transform_indices = @transform_1, window_bounds = array<i64: 1, 1024>}, {transform_indices = @transform_2, window_bounds = array<i64: 8, 128>}, {transform_indices = @transform_3, window_bounds = array<i64: 8, 1024>}]} {
    %c0 = arith.constant 0 : index
    %c0_0 = arith.constant 0 : index
    %0 = vector.load %arg3[%c0, %c0_0] : memref<8x128xf32, #tpu.memory_space<vmem>>, vector<8x128xf32>
    %1 = tpu.concatenate %0, %0, %0, %0, %0, %0, %0, %0 in 1 : vector<8x128xf32>, vector<8x128xf32>, vector<8x128xf32>, vector<8x128xf32>, vector<8x128xf32>, vector<8x128xf32>, vector<8x128xf32>, vector<8x128xf32> -> vector<8x1024xf32>
    %c0_1 = arith.constant 0 : index
    %c0_2 = arith.constant 0 : index
    %2 = vector.load %arg1[%c0_1, %c0_2] : memref<8x1024xf32, #tpu.memory_space<vmem>>, vector<8x1024xf32>
    %c0_3 = arith.constant 0 : index
    %c0_4 = arith.constant 0 : index
    %3 = vector.load %arg2[%c0_3, %c0_4] : memref<1x1024xf32, #tpu.memory_space<vmem>>, vector<1x1024xf32>
    %4 = vector.broadcast %3 : vector<1x1024xf32> to vector<8x1024xf32>
    %5 = arith.addf %2, %4 : vector<8x1024xf32>
    %6 = arith.addf %5, %1 : vector<8x1024xf32>
    %c0_5 = arith.constant 0 : index
    %c0_6 = arith.constant 0 : index
    %7 = vector.load %arg4[%c0_5, %c0_6] : memref<8x1024xf32, #tpu.memory_space<vmem>>, vector<8x1024xf32>
    tpu.vector_store %arg4[%c0_5, %c0_6], %6 {strides = array<i32>} : memref<8x1024xf32, #tpu.memory_space<vmem>>, vector<8x1024xf32>,
    return
  }
  func.func @transform_0(%arg0: i32) -> (i32, i32) {
    %c0_i32 = arith.constant 0 : i32
    %c0_i32_0 = arith.constant 0 : i32
    return %arg0, %c0_i32 : i32, i32
  }
  func.func @transform_1(%arg0: i32) -> (i32, i32) {
    %c0_i32 = arith.constant 0 : i32
    %c0_i32_0 = arith.constant 0 : i32
    %c0_i32_1 = arith.constant 0 : i32
    return %c0_i32, %c0_i32_0 : i32, i32
  }
  func.func @transform_2(%arg0: i32) -> (i32, i32) {
    %c0_i32 = arith.constant 0 : i32
    %c0_i32_0 = arith.constant 0 : i32
    return %arg0, %c0_i32 : i32, i32
  }
  func.func @transform_3(%arg0: i32) -> (i32, i32) {
    %c0_i32 = arith.constant 0 : i32
    %c0_i32_0 = arith.constant 0 : i32
    return %arg0, %c0_i32 : i32, i32
  }
}

</mosaic_0001>

<llo_original>
// kernel: tpu_custom_call.1
$region0: #{tpu_custom_call.1}
  #allocation0 [shape = 'u32[]', space=smem, size = 0x4, offset = 0x4, fixed_abs, tag = 'smem constant byte address 0x4 - core index']
  #allocation1 [shape = 'u32[144,128]{1,0:T(1,128)}', space=vmem, size = 0x12000, scoped, tag = 'internal scratch']
  %s0 = inlined_call_operand.hbm [shape: f32[8,1024], index: 0, kind: input, shape index: {}, may-alias: {0,3}]
  %s1 = inlined_call_operand.vmem [shape: f32[1,1024], index: 1, kind: input, shape index: {}]
  %s2 = inlined_call_operand.vmem [shape: f32[8,128], index: 2, kind: input, shape index: {}]
  %s3 = inlined_call_operand.hbm [shape: f32[8,1024], index: 3, kind: output, shape index: {}, may-alias: {0,3}]
  %s4 = sld [smem:[#allocation0]]
  $region26: #{tpu_custom_call.1} parent=0
    _
  %s6 = ssub.s32 1, %s4
  %s7 = scalar_select 0, %s6, %s4
  $region1: #{tpu_custom_call.1} parent=0
    #allocation2 [shape = 'u8[32768]{0}', space=vmem, size = 0x8000, scoped, tag = 'input window, operand 0, single buffered']
    #allocation3 [shape = 's32[1]{0}', space=sflag, size = 0x4, scoped, tag = 'scoped memory for tpu_custom_call.1']
    #allocation4 [shape = 's32[1]{0}', space=sflag, size = 0x4, scoped, tag = 'scoped memory for tpu_custom_call.1']
    #allocation5 [shape = 'u8[32768]{0}', space=vmem, size = 0x8000, scoped, tag = 'output window, operand 0, single buffered']
    %8 = vsyncpa [#allocation3], 0
    %9 = vsyncpa [#allocation4], 0
    // Predicated region
    $region2: #{tpu_custom_call.1} parent=1 // pred_check
      _
    $region3: #{tpu_custom_call.1} parent=1 // pred_check_branch
      %11 = sbr.rel (0) target = $region5
    $region4: #{tpu_custom_call.1} parent=1 // pred_region
      %s13 = ssub.s32 1024, 1024
      %14 = vsyncadd [#allocation3], %s13
      %s16 = sshll.u32 [#allocation2], 4
      %s17 = int_to_ptr.vmem [resolvable:$true] %s16
      %19 = dma.hbm_to_vmem [thread:$0]  %s0, 1024, %s17, [#allocation3]
    $region5: #{tpu_custom_call.1} parent=1 // pred_fallthru
      _
    // Predicated region
    $region6: #{tpu_custom_call.1} parent=1 // pred_check
      _
    $region7: #{tpu_custom_call.1} parent=1 // pred_check_branch
      %21 = sbr.rel (0) target = $region9
    $region8: #{tpu_custom_call.1} parent=1 // pred_region
      _
    $region9: #{tpu_custom_call.1} parent=1 // pred_fallthru
      _
    // Predicated region
    $region10: #{tpu_custom_call.1} parent=1 // pred_check
      _
    $region11: #{tpu_custom_call.1} parent=1 // pred_check_branch
      %23 = sbr.rel (0) target = $region13
    $region12: #{tpu_custom_call.1} parent=1 // pred_region
      _
    $region13: #{tpu_custom_call.1} parent=1 // pred_fallthru
      _
    // Predicated region
    $region14: #{tpu_custom_call.1} parent=1 // pred_check
      _
    $region15: #{tpu_custom_call.1} parent=1 // pred_check_branch
      %25 = sbr.rel (0) target = $region17
    $region16: #{tpu_custom_call.1} parent=1 // pred_region
      %26 = dma.done [#allocation3], 1024
    $region17: #{tpu_custom_call.1} parent=1 // pred_fallthru
      _
    %v27 = vld [vmem:[%s2] sm:$0xff]
    %v28 = vld [vmem:[#allocation2] sm:$0xff]
    %v29 = vld [vmem:[#allocation2 + $0x8] sm:$0xff]
    %v30 = vld [vmem:[#allocation2 + $0x10] sm:$0xff]
    %v31 = vld [vmem:[#allocation2 + $0x18] sm:$0xff]
    %v32 = vld [vmem:[#allocation2 + $0x20] sm:$0xff]
    %v33 = vld [vmem:[#allocation2 + $0x28] sm:$0xff]
    %v34 = vld [vmem:[#allocation2 + $0x30] sm:$0xff]
    %v35 = vld [vmem:[#allocation2 + $0x38] sm:$0xff]
    %v36 = vld [vmem:[%s1] sm:$0xff]
    %v38 = vlaneseq
    %v39 = vshrl.u32 %v38, 7
    %v40 = vsub.s32 0, %v39
    %v41 = vrot.slane %v36, %v40
    %v42 = vlaneseq
    %v43 = vshrl.u32 %v42, 7
    %v44 = vsub.s32 1, %v43
    %v45 = vrot.slane %v36, %v44
    %v46 = vlaneseq
    %v47 = vshrl.u32 %v46, 7
    %v48 = vsub.s32 2, %v47
    %v49 = vrot.slane %v36, %v48
    %v50 = vlaneseq
    %v51 = vshrl.u32 %v50, 7
    %v52 = vsub.s32 3, %v51
    %v53 = vrot.slane %v36, %v52
    %v54 = vlaneseq
    %v55 = vshrl.u32 %v54, 7
    %v56 = vsub.s32 4, %v55
    %v57 = vrot.slane %v36, %v56
    %v58 = vlaneseq
    %v59 = vshrl.u32 %v58, 7
    %v60 = vsub.s32 5, %v59
    %v61 = vrot.slane %v36, %v60
    %v62 = vlaneseq
    %v63 = vshrl.u32 %v62, 7
    %v64 = vsub.s32 6, %v63
    %v65 = vrot.slane %v36, %v64
    %v66 = vlaneseq
    %v67 = vshrl.u32 %v66, 7
    %v68 = vsub.s32 7, %v67
    %v69 = vrot.slane %v36, %v68
    %v78 = vadd.f32 %v28, %v41
    %v79 = vadd.f32 %v29, %v45
    %v80 = vadd.f32 %v30, %v49
    %v81 = vadd.f32 %v31, %v53
    %v82 = vadd.f32 %v32, %v57
    %v83 = vadd.f32 %v33, %v61
    %v84 = vadd.f32 %v34, %v65
    %v85 = vadd.f32 %v35, %v69
    %v86 = vadd.f32 %v78, %v27
    %v87 = vadd.f32 %v79, %v27
    %v88 = vadd.f32 %v80, %v27
    %v89 = vadd.f32 %v81, %v27
    %v90 = vadd.f32 %v82, %v27
    %v91 = vadd.f32 %v83, %v27
    %v92 = vadd.f32 %v84, %v27
    %v93 = vadd.f32 %v85, %v27
    %94 = vst [vmem:[#allocation5] sm:$0xff] %v86
    %95 = vst [vmem:[#allocation5 + $0x8] sm:$0xff] %v87
    %96 = vst [vmem:[#allocation5 + $0x10] sm:$0xff] %v88
    %97 = vst [vmem:[#allocation5 + $0x18] sm:$0xff] %v89
    %98 = vst [vmem:[#allocation5 + $0x20] sm:$0xff] %v90
    %99 = vst [vmem:[#allocation5 + $0x28] sm:$0xff] %v91
    %100 = vst [vmem:[#allocation5 + $0x30] sm:$0xff] %v92
    %101 = vst [vmem:[#allocation5 + $0x38] sm:$0xff] %v93
    // Predicated region
    $region18: #{tpu_custom_call.1} parent=1 // pred_check
      _
    $region19: #{tpu_custom_call.1} parent=1 // pred_check_branch
      %103 = sbr.rel (0) target = $region21
    $region20: #{tpu_custom_call.1} parent=1 // pred_region
      %s105 = ssub.s32 1024, 1024
      %106 = vsyncadd [#allocation4], %s105
      %s108 = sshll.u32 [#allocation5], 4
      %s109 = int_to_ptr.vmem [resolvable:$true] %s108
      %111 = dma.vmem_to_hbm [thread:$0]  %s109, 1024, %s3, [#allocation4]
    $region21: #{tpu_custom_call.1} parent=1 // pred_fallthru
      _
    // Predicated region
    $region22: #{tpu_custom_call.1} parent=1 // pred_check
      _
    $region23: #{tpu_custom_call.1} parent=1 // pred_check_branch
      %113 = sbr.rel (0) target = $region25
    $region24: #{tpu_custom_call.1} parent=1 // pred_region
      %114 = dma.done [#allocation4], 1024
    $region25: #{tpu_custom_call.1} parent=1 // pred_fallthru
      _
    %115 = vsyncpa [#allocation3], 1
    %116 = vsyncpa [#allocation4], 1

</llo_original>
